<compile_context>
chip_gen: v7x
topology: tpu7x:2x2x1
jax: 0.10.0
libtpu: 0.0.40
codegen_flags: <defaults>
</compile_context>

<pallas_src>
import numpy as np
import jax
import jax.numpy as jnp
from jax.experimental import pallas as pl
from jax.experimental.pallas import tpu as pltpu

# ---------------- small, module-consistent shapes ----------------
B = 2            # batch
C_FEAT = 64      # backbone output channels (stand-in for densenet121's 1024)
D = 32           # hid_dim
ENC_RES = 4      # spatial resolution of the backbone feature map
N_TOK = ENC_RES * ENC_RES
NCLS = 3         # nclasses
NCLS_PAD = 128   # lane-dense padded classifier width


# ---------------- Pallas kernel (whole batch in one grid step) ----------------
def default_cnn_kernel(x_ref, params_ref, logits_ref, feat_ref):
    # x_ref:      [B, C_FEAT, N_TOK] bf16  (channel-major; pure reshape of NCHW)
    # params_ref: [2*D + 1, NCLS_PAD] bf16 (packed weights; layout in init_params)
    # logits_ref: [B, NCLS_PAD] f32        (lane-dense; wrapper slices [:, :NCLS])
    # feat_ref:   [B, D, N_TOK] f32        (NCHW element order)
    w_conv = params_ref[0:D, 0:C_FEAT]                               # [D, C]   bf16
    b_conv = params_ref[0:D, C_FEAT:C_FEAT + 1].astype(jnp.float32)  # [D, 1]   f32
    w_cls = params_ref[D:2 * D, :].astype(jnp.float32)               # [D, 128] f32
    b_cls = params_ref[2 * D:2 * D + 1, :].astype(jnp.float32)       # [1, 128] f32

    logit_rows = []
    for b in range(B):   # static unroll (B tiny); grid stays (1,) -> one pipeline prologue
        # ResNet18.hid_dim: 1x1 conv over channels == channel matmul (MXU, bf16 -> f32 acc)
        fb = jnp.dot(w_conv, x_ref[b], preferred_element_type=jnp.float32)   # [D, N]
        fb = fb + b_conv
        feat_ref[b] = fb

        # adaptive_avg_pool2d((1,1)).squeeze(): mean over tokens (lane-axis reduce)
        pooled = jnp.mean(fb, axis=-1, keepdims=True)                        # [D, 1]

        # classifier Linear(hid_dim, nclasses): effective K=3 (padded to 128), so a
        # broadcast-multiply + sublane reduce is cheaper than an MXU pass and keeps
        # the result lane-major with no transposes.
        logit_rows.append(jnp.sum(pooled * w_cls, axis=0, keepdims=True) + b_cls)  # [1, 128]

    logits_ref[...] = jnp.concatenate(logit_rows, axis=0)                    # [B, 128] lane-dense


# ---------------- parameter init (deterministic, synthetic, packed) -----------
def init_params(key):
    """Torch-style uniform params packed host-side (numpy, once) into one bf16 slab:
        rows [0:D),  cols [0:C_FEAT) : w_conv  (1x1 conv weight, [D, C])
        rows [0:D),  col  C_FEAT     : b_conv
        rows [D:2D), cols [0:NCLS)   : w_cls^T (classifier weight, zero-padded to 128 lanes)
        row  2D,     cols [0:NCLS)   : b_cls
    """
    k1, k2, k3, k4 = jax.random.split(key, 4)

    def torch_linear(kw, kb, fan_in, fan_out):
        bound = 1.0 / np.sqrt(fan_in)
        w = np.asarray(jax.random.uniform(kw, (fan_out, fan_in), jnp.float32, -bound, bound))
        b = np.asarray(jax.random.uniform(kb, (fan_out,), jnp.float32, -bound, bound))
        return w, b

    w_conv, b_conv = torch_linear(k1, k2, C_FEAT, D)   # [D, C], [D]
    w_cls, b_cls = torch_linear(k3, k4, D, NCLS)       # [NCLS, D], [NCLS]

    pack = np.zeros((2 * D + 1, NCLS_PAD), np.float32)
    pack[0:D, 0:C_FEAT] = w_conv
    pack[0:D, C_FEAT] = b_conv
    pack[D:2 * D, 0:NCLS] = w_cls.T
    pack[2 * D, 0:NCLS] = b_cls
    return jnp.asarray(pack, dtype=jnp.bfloat16)


# ---------------- wrapper ------------------------------------------------------
@jax.jit
def _forward_core(feats_nchw, params_packed):
    # channel-major token view: pure reshape of NCHW (no transpose); bf16 for the MXU
    x = feats_nchw.reshape(B, C_FEAT, N_TOK).astype(jnp.bfloat16)

    logits_pad, feat = pl.pallas_call(
        default_cnn_kernel,
        out_shape=(jax.ShapeDtypeStruct((B, NCLS_PAD), jnp.float32),
                   jax.ShapeDtypeStruct((B, D, N_TOK), jnp.float32)),
        grid=(1,),
        in_specs=[pl.BlockSpec((B, C_FEAT, N_TOK), lambda i: (0, 0, 0)),
                  pl.BlockSpec((2 * D + 1, NCLS_PAD), lambda i: (0, 0))],
        out_specs=(pl.BlockSpec((B, NCLS_PAD), lambda i: (0, 0)),
                   pl.BlockSpec((B, D, N_TOK), lambda i: (0, 0, 0))),
        compiler_params=pltpu.CompilerParams(
            dimension_semantics=("arbitrary",)),
    )(x, params_packed)

    logits = logits_pad[:, :NCLS]                      # [B, nclasses]
    features = feat.reshape(B, D, ENC_RES, ENC_RES)    # NCHW, pure reshape (no transpose)
    return logits, features


def default_cnn_forward(feats_nchw, params_packed):
    logits, features = _forward_core(feats_nchw, params_packed)
    # module forward returns (classifier_out, features, 0, 0, 0)
    return logits, features, 0, 0, 0


# ---------------- pure-JAX reference (for a correctness spot-check) ------------
def _reference_forward(feats_nchw, params_packed):
    p = params_packed.astype(jnp.float32)
    w_conv = p[0:D, 0:C_FEAT]
    b_conv = p[0:D, C_FEAT]
    w_cls = p[D:2 * D, 0:NCLS]
    b_cls = p[2 * D, 0:NCLS]
    x = feats_nchw.astype(jnp.bfloat16).astype(jnp.float32).reshape(B, C_FEAT, N_TOK)
    feat = jnp.einsum('dc,bcn->bdn', w_conv, x) + b_conv[None, :, None]
    logits = feat.mean(axis=-1) @ w_cls + b_cls[None, :]
    return logits, feat.reshape(B, D, ENC_RES, ENC_RES)


# ---------------- main ---------------------------------------------------------
if __name__ == "__main__":
    key = jax.random.PRNGKey(0)
    k_feat, k_param = jax.random.split(key)

    # synthetic densenet121 feature map (NCHW), stand-in for the pretrained backbone
    feats = jax.random.normal(k_feat, (B, C_FEAT, ENC_RES, ENC_RES), jnp.float32)
    params_packed = init_params(k_param)

    logits, features, _z0, _z1, _z2 = default_cnn_forward(feats, params_packed)
    jax.block_until_ready((logits, features))

    assert logits.shape == (B, NCLS)
    assert features.shape == (B, D, ENC_RES, ENC_RES)
    assert bool(jnp.all(jnp.isfinite(logits)))
    assert bool(jnp.all(jnp.isfinite(features)))

    ref_logits, ref_features = _reference_forward(feats, params_packed)
    assert bool(jnp.allclose(logits, ref_logits, atol=1e-3, rtol=1e-3))
    assert bool(jnp.allclose(features, ref_features, atol=1e-3, rtol=1e-3))

    print("KERNEL_OK")
</pallas_src>

<mosaic_0001>
module attributes {stable_mosaic.version = 11 : i64} {
  func.func @default_cnn_kernel(%arg0: i32, %arg1: memref<2x64x16xbf16, #tpu.memory_space<vmem>>, %arg2: memref<65x128xbf16, #tpu.memory_space<vmem>>, %arg3: memref<2x128xf32, #tpu.memory_space<vmem>>, %arg4: memref<2x32x16xf32, #tpu.memory_space<vmem>>) attributes {dimension_semantics = [#tpu.dimension_semantics<arbitrary>], iteration_bounds = array<i64: 1>, scalar_prefetch = 0 : i64, scratch_operands = 0 : i64, tpu.core_type = #tpu.core_type<tc>, window_params = [{pipeline_mode = #tpu.pipeline_mode<synchronous>, transform_indices = @transform_0, window_bounds = array<i64: 2, 64, 16>}, {pipeline_mode = #tpu.pipeline_mode<synchronous>, transform_indices = @transform_1, window_bounds = array<i64: 65, 128>}, {pipeline_mode = #tpu.pipeline_mode<synchronous>, transform_indices = @transform_2, window_bounds = array<i64: 2, 128>}, {pipeline_mode = #tpu.pipeline_mode<synchronous>, transform_indices = @transform_3, window_bounds = array<i64: 2, 32, 16>}]} {
    %c0 = arith.constant 0 : index
    %c0_0 = arith.constant 0 : index
    %0 = vector.load %arg2[%c0, %c0_0] : memref<65x128xbf16, #tpu.memory_space<vmem>>, vector<32x64xbf16>
    %c0_1 = arith.constant 0 : index
    %c64 = arith.constant 64 : index
    %1 = vector.load %arg2[%c0_1, %c64] : memref<65x128xbf16, #tpu.memory_space<vmem>>, vector<32x1xbf16>
    %2 = arith.extf %1 : vector<32x1xbf16> to vector<32x1xf32>
    %c32 = arith.constant 32 : index
    %c0_2 = arith.constant 0 : index
    %3 = vector.load %arg2[%c32, %c0_2] : memref<65x128xbf16, #tpu.memory_space<vmem>>, vector<32x128xbf16>
    %4 = arith.extf %3 : vector<32x128xbf16> to vector<32x128xf32>
    %c64_3 = arith.constant 64 : index
    %c0_4 = arith.constant 0 : index
    %5 = vector.load %arg2[%c64_3, %c0_4] : memref<65x128xbf16, #tpu.memory_space<vmem>>, vector<1x128xbf16>
    %6 = arith.extf %5 : vector<1x128xbf16> to vector<1x128xf32>
    %c0_5 = arith.constant 0 : index
    %c0_6 = arith.constant 0 : index
    %c0_7 = arith.constant 0 : index
    %7 = vector.load %arg1[%c0_5, %c0_6, %c0_7] : memref<2x64x16xbf16, #tpu.memory_space<vmem>>, vector<1x64x16xbf16>
    %8 = vector.shape_cast %7 : vector<1x64x16xbf16> to vector<64x16xbf16>
    %cst = arith.constant dense<0.000000e+00> : vector<32x16xf32>
    %9 = tpu.matmul %0, %8, %cst {dimension_numbers = #tpu.dot_dimension_numbers<[1], [0], [0], [1], [0, 0, 1, 1], [], []>} : vector<32x64xbf16>, vector<64x16xbf16>, vector<32x16xf32> -> vector<32x16xf32>
    %10 = vector.broadcast %2 : vector<32x1xf32> to vector<32x16xf32>
    %11 = arith.addf %9, %10 : vector<32x16xf32>
    %c0_8 = arith.constant 0 : index
    %c0_9 = arith.constant 0 : index
    %c0_10 = arith.constant 0 : index
    %12 = vector.load %arg4[%c0_8, %c0_9, %c0_10] : memref<2x32x16xf32, #tpu.memory_space<vmem>>, vector<1x32x16xf32>
    %13 = vector.shape_cast %12 : vector<1x32x16xf32> to vector<32x16xf32>
    %14 = vector.shape_cast %11 : vector<32x16xf32> to vector<1x32x16xf32>
    tpu.vector_store %arg4[%c0_8, %c0_9, %c0_10], %14 {strides = array<i32>} : memref<2x32x16xf32, #tpu.memory_space<vmem>>, vector<1x32x16xf32>,
    %cst_11 = arith.constant dense<0.000000e+00> : vector<32xf32>
    %15 = vector.multi_reduction <add>, %11, %cst_11 [1] : vector<32x16xf32> to vector<32xf32>
    %16 = vector.shape_cast %15 : vector<32xf32> to vector<32x1xf32>
    %cst_12 = arith.constant 1.600000e+01 : f32
    %17 = vector.broadcast %cst_12 : f32 to vector<32x1xf32>
    %18 = arith.divf %16, %17 : vector<32x1xf32>
    %19 = vector.broadcast %18 : vector<32x1xf32> to vector<32x128xf32>
    %20 = arith.mulf %19, %4 : vector<32x128xf32>
    %cst_13 = arith.constant dense<0.000000e+00> : vector<128xf32>
    %21 = vector.multi_reduction <add>, %20, %cst_13 [0] : vector<32x128xf32> to vector<128xf32>
    %22 = vector.shape_cast %21 : vector<128xf32> to vector<1x128xf32>
    %23 = arith.addf %22, %6 : vector<1x128xf32>
    %c1 = arith.constant 1 : index
    %c0_14 = arith.constant 0 : index
    %c0_15 = arith.constant 0 : index
    %24 = vector.load %arg1[%c1, %c0_14, %c0_15] : memref<2x64x16xbf16, #tpu.memory_space<vmem>>, vector<1x64x16xbf16>
    %25 = vector.shape_cast %24 : vector<1x64x16xbf16> to vector<64x16xbf16>
    %cst_16 = arith.constant dense<0.000000e+00> : vector<32x16xf32>
    %26 = tpu.matmul %0, %25, %cst_16 {dimension_numbers = #tpu.dot_dimension_numbers<[1], [0], [0], [1], [0, 0, 1, 1], [], []>} : vector<32x64xbf16>, vector<64x16xbf16>, vector<32x16xf32> -> vector<32x16xf32>
    %27 = vector.broadcast %2 : vector<32x1xf32> to vector<32x16xf32>
    %28 = arith.addf %26, %27 : vector<32x16xf32>
    %c1_17 = arith.constant 1 : index
    %c0_18 = arith.constant 0 : index
    %c0_19 = arith.constant 0 : index
    %29 = vector.load %arg4[%c1_17, %c0_18, %c0_19] : memref<2x32x16xf32, #tpu.memory_space<vmem>>, vector<1x32x16xf32>
    %30 = vector.shape_cast %29 : vector<1x32x16xf32> to vector<32x16xf32>
    %31 = vector.shape_cast %28 : vector<32x16xf32> to vector<1x32x16xf32>
    tpu.vector_store %arg4[%c1_17, %c0_18, %c0_19], %31 {strides = array<i32>} : memref<2x32x16xf32, #tpu.memory_space<vmem>>, vector<1x32x16xf32>,
    %cst_20 = arith.constant dense<0.000000e+00> : vector<32xf32>
    %32 = vector.multi_reduction <add>, %28, %cst_20 [1] : vector<32x16xf32> to vector<32xf32>
    %33 = vector.shape_cast %32 : vector<32xf32> to vector<32x1xf32>
    %cst_21 = arith.constant 1.600000e+01 : f32
    %34 = vector.broadcast %cst_21 : f32 to vector<32x1xf32>
    %35 = arith.divf %33, %34 : vector<32x1xf32>
    %36 = vector.broadcast %35 : vector<32x1xf32> to vector<32x128xf32>
    %37 = arith.mulf %36, %4 : vector<32x128xf32>
    %cst_22 = arith.constant dense<0.000000e+00> : vector<128xf32>
    %38 = vector.multi_reduction <add>, %37, %cst_22 [0] : vector<32x128xf32> to vector<128xf32>
    %39 = vector.shape_cast %38 : vector<128xf32> to vector<1x128xf32>
    %40 = arith.addf %39, %6 : vector<1x128xf32>
    %41 = tpu.concatenate %23, %40 in 0 : vector<1x128xf32>, vector<1x128xf32> -> vector<2x128xf32>
    %c0_23 = arith.constant 0 : index
    %c0_24 = arith.constant 0 : index
    %42 = vector.load %arg3[%c0_23, %c0_24] : memref<2x128xf32, #tpu.memory_space<vmem>>, vector<2x128xf32>
    tpu.vector_store %arg3[%c0_23, %c0_24], %41 {strides = array<i32>} : memref<2x128xf32, #tpu.memory_space<vmem>>, vector<2x128xf32>,
    return
  }
  func.func @transform_0(%arg0: i32) -> (i32, i32, i32) {
    %c0_i32 = arith.constant 0 : i32
    %c0_i32_0 = arith.constant 0 : i32
    %c0_i32_1 = arith.constant 0 : i32
    %c0_i32_2 = arith.constant 0 : i32
    return %c0_i32, %c0_i32_0, %c0_i32_1 : i32, i32, i32
  }
  func.func @transform_1(%arg0: i32) -> (i32, i32) {
    %c0_i32 = arith.constant 0 : i32
    %c0_i32_0 = arith.constant 0 : i32
    %c0_i32_1 = arith.constant 0 : i32
    return %c0_i32, %c0_i32_0 : i32, i32
  }
  func.func @transform_2(%arg0: i32) -> (i32, i32) {
    %c0_i32 = arith.constant 0 : i32
    %c0_i32_0 = arith.constant 0 : i32
    %c0_i32_1 = arith.constant 0 : i32
    return %c0_i32, %c0_i32_0 : i32, i32
  }
  func.func @transform_3(%arg0: i32) -> (i32, i32, i32) {
    %c0_i32 = arith.constant 0 : i32
    %c0_i32_0 = arith.constant 0 : i32
    %c0_i32_1 = arith.constant 0 : i32
    %c0_i32_2 = arith.constant 0 : i32
    return %c0_i32, %c0_i32_0, %c0_i32_1 : i32, i32, i32
  }
}

</mosaic_0001>

<llo_original>
// kernel: _forward_core.1
$region0: #{_forward_core.1}
  #allocation0 [shape = 'u32[]', space=smem, size = 0x4, offset = 0x4, fixed_abs, tag = 'smem constant byte address 0x4 - core index']
  #allocation1 [shape = 'u32[144,128]{1,0:T(1,128)}', space=vmem, size = 0x12000, scoped, tag = 'internal scratch']
  %s0 = inlined_call_operand.vmem [shape: bf16[2,64,16], index: 0, kind: input, shape index: {}]
  %s1 = inlined_call_operand.vmem [shape: bf16[65,128], index: 1, kind: input, shape index: {}]
  %s2 = inlined_call_operand.hbm [shape: f32[2,128], index: 2, kind: output, shape index: {0}]
  %s3 = inlined_call_operand.vmem [shape: f32[2,32,16], index: 3, kind: output, shape index: {1}]
  %4 = xla_tuple %s2, %s3
  %s5 = sld [smem:[#allocation0]]
  $region26: #{_forward_core.1} parent=0
    _
  %s7 = ssub.s32 1, %s5
  %s8 = scalar_select 0, %s7, %s5
  $region1: #{_forward_core.1} parent=0
    #allocation2 [shape = 'u8[1024]{0}', space=vmem, size = 0x400, scoped, tag = 'output window, operand 0, single buffered']
    #allocation3 [shape = 's32[1]{0}', space=sflag, size = 0x4, scoped, tag = 'scoped memory for _forward_core.1']
    %9 = vsyncpa [#allocation3], 0
    // Predicated region
    $region2: #{_forward_core.1} parent=1 // pred_check
      _
    $region3: #{_forward_core.1} parent=1 // pred_check_branch
      %11 = sbr.rel (0) target = $region5
    $region4: #{_forward_core.1} parent=1 // pred_region
      _
    $region5: #{_forward_core.1} parent=1 // pred_fallthru
      _
    // Predicated region
    $region6: #{_forward_core.1} parent=1 // pred_check
      _
    $region7: #{_forward_core.1} parent=1 // pred_check_branch
      %13 = sbr.rel (0) target = $region9
    $region8: #{_forward_core.1} parent=1 // pred_region
      _
    $region9: #{_forward_core.1} parent=1 // pred_fallthru
      _
    %v15 = vld [vmem:[%s1] sm:$0xf]
    %v16 = vld [vmem:[%s1 + $0x4] sm:$0xf]
    %v17 = vld [vmem:[%s1 + $0x8] sm:$0xf]
    %v18 = vld [vmem:[%s1 + $0xc] sm:$0xf]
    %v19 = vunpack.c.l.bf16 %v15
    %v20 = vunpack.c.l.bf16 %v16
    %v21 = vunpack.c.l.bf16 %v17
    %v22 = vunpack.c.l.bf16 %v18
    %v23 = vld [vmem:[%s1 + $0x10] sm:$0xf]
    %v24 = vld [vmem:[%s1 + $0x14] sm:$0xf]
    %v25 = vld [vmem:[%s1 + $0x18] sm:$0xf]
    %v26 = vld [vmem:[%s1 + $0x1c] sm:$0xf]
    %v27 = vunpack.c.l.bf16 %v23
    %v28 = vunpack.c.l.bf16 %v24
    %v29 = vunpack.c.l.bf16 %v25
    %v30 = vunpack.c.l.bf16 %v26
    %v31 = vld [vmem:[%s1 + $0x20] sm:$0x1]
    %v32 = vunpack.c.l.bf16 %v31
    %v33 = vld [vmem:[%s0] sm:$0xf]
    %v34 = vld [vmem:[%s0 + $0x4] sm:$0xf]
    %v35 = vld [vmem:[%s0 + $0x8] sm:$0xf]
    %v36 = vld [vmem:[%s0 + $0xc] sm:$0xf]
    %v37 = vld [vmem:[%s0 + $0x10] sm:$0xf]
    %v38 = vld [vmem:[%s0 + $0x14] sm:$0xf]
    %v39 = vld [vmem:[%s0 + $0x18] sm:$0xf]
    %v40 = vld [vmem:[%s0 + $0x1c] sm:$0xf]
    %42 = vset.pattern.permute.xlu0 64
    %43 = vperm.xlu0 %42, %v19
    %v44 = vpop.permute.xlu0 %43
    %47 = vset.pattern.permute.xlu0 64
    %48 = vperm.xlu0 %47, %v20
    %v49 = vpop.permute.xlu0 %48
    %52 = vset.pattern.permute.xlu0 64
    %53 = vperm.xlu0 %52, %v21
    %v54 = vpop.permute.xlu0 %53
    %57 = vset.pattern.permute.xlu0 64
    %58 = vperm.xlu0 %57, %v22
    %v59 = vpop.permute.xlu0 %58
    %v65 = vunpack.c.l.b16 %v15
    %v66 = vunpack.c.l.b16 %v16
    %v67 = vunpack.c.l.b16 %v17
    %v68 = vunpack.c.l.b16 %v18
    %v69 = vpack.c.b16 %v66, %v65
    %v70 = vpack.c.b16 %v68, %v67
    %v79 = vunpack.c.l.b16 %v33
    %v80 = vunpack.c.l.b16 %v34
    %v81 = vunpack.c.l.b16 %v35
    %v82 = vunpack.c.l.b16 %v36
    %v83 = vunpack.c.l.b16 %v37
    %v84 = vunpack.c.l.b16 %v38
    %v85 = vunpack.c.l.b16 %v39
    %v86 = vunpack.c.l.b16 %v40
    %v87 = vpack.c.b16 %v80, %v79
    %v88 = vpack.c.b16 %v82, %v81
    %v89 = vpack.c.b16 %v84, %v83
    %v90 = vpack.c.b16 %v86, %v85
    %vm95 = vcmask 523264
    %v97 = vsel %vm95, %v69, 0
    %v100 = vsel %vm95, %v70, 0
    %102 = vmatprep.subr.bf16.mxu0 0
    %103 = vmatpush1.bf16.msra.mxu0 %v87
    %104 = vmatprep.subr.bf16.mxu0 0
    %105 = vmatpush1.bf16.msra.mxu0 %v88
    %106 = vmatprep.subr.bf16.mxu0 0
    %107 = vmatpush1.bf16.msra.mxu0 %v89
    %108 = vmatprep.subr.bf16.mxu0 0
    %109 = vmatpush1.bf16.msra.mxu0 %v90
    %110 = vmatprep.subr.bf16.mxu0 0
    %111 = vmatpush1.bf16.msra.mxu0 0
    %112 = vmatprep.subr.bf16.mxu0 0
    %113 = vmatpush1.bf16.msra.mxu0 0
    %114 = vmatprep.subr.bf16.mxu0 0
    %115 = vmatpush1.bf16.msra.mxu0 0
    %116 = vmatprep.subr.bf16.mxu0 0
    %117 = vmatpush1.bf16.msra.mxu0 0
    %118 = vmatprep.subr.bf16.mxu0 0
    %119 = vmatpush1.bf16.msra.mxu0 0
    %120 = vmatprep.subr.bf16.mxu0 0
    %121 = vmatpush1.bf16.msra.mxu0 0
    %122 = vmatprep.subr.bf16.mxu0 0
    %123 = vmatpush1.bf16.msra.mxu0 0
    %124 = vmatprep.subr.bf16.mxu0 0
    %125 = vmatpush1.bf16.msra.mxu0 0
    %126 = vmatprep.subr.bf16.mxu0 0
    %127 = vmatpush1.bf16.msra.mxu0 0
    %128 = vmatprep.subr.bf16.mxu0 0
    %129 = vmatpush1.bf16.msra.mxu0 0
    %130 = vmatprep.subr.bf16.mxu0 0
    %131 = vmatpush1.bf16.msra.mxu0 0
    %132 = vmatprep.subr.bf16.mxu0 0
    %133 = vmatpush1.bf16.msra.mxu0 0
    %134 = vmatprep.mubr.bf16.mxu0 0
    %135 = vmatmul.mubr.bf16.gmra.mrb[0].mxu0 %v97
    %v136 = vpop.f32.mrb[0].mxu0
    %v137 = vadd.f32 %v44, %v136
    %v138 = vpop.f32.mrb[0].mxu0
    %v139 = vpop.f32.mrb[0].mxu0
    %v140 = vadd.f32 %v49, %v139
    %v141 = vpop.f32.mrb[0].mxu0
    %142 = vmatprep.mubr.bf16.mxu0 0
    %143 = vmatmul.mubr.bf16.gmra.mrb[0].mxu0 %v100
    %v144 = vpop.f32.mrb[0].mxu0
    %v145 = vadd.f32 %v54, %v144
    %v146 = vpop.f32.mrb[0].mxu0
    %v147 = vpop.f32.mrb[0].mxu0
    %v148 = vadd.f32 %v59, %v147
    %v149 = vpop.f32.mrb[0].mxu0
    %150 = vdwg.mxu0
    %vm151 = vcmask 130048
    %152 = vst.msk [vmem:[%s3] sm:$0xff] %vm151, %v137
    %153 = vst.msk [vmem:[%s3 + $0x8] sm:$0xff] %vm151, %v140
    %154 = vst.msk [vmem:[%s3 + $0x10] sm:$0xff] %vm151, %v145
    %155 = vst.msk [vmem:[%s3 + $0x18] sm:$0xff] %vm151, %v148
    %v156 = vsel %vm151, %v137, 0.0
    %157 = vadd.xlane.f32.xlu0 %v156
    %v158 = vpop.xlane.xlu0 %157
    %v159 = vsel %vm151, %v140, 0.0
    %160 = vadd.xlane.f32.xlu0 %v159
    %v161 = vpop.xlane.xlu0 %160
    %v162 = vsel %vm151, %v145, 0.0
    %163 = vadd.xlane.f32.xlu0 %v162
    %v164 = vpop.xlane.xlu0 %163
    %v165 = vsel %vm151, %v148, 0.0
    %166 = vadd.xlane.f32.xlu0 %v165
    %v167 = vpop.xlane.xlu0 %166
    %v168 = vrcp.pop 16.0
    %v169 = vmul.f32 %v158, %v168
    %v170 = vmul.f32 %v161, %v168
    %v171 = vmul.f32 %v164, %v168
    %v172 = vmul.f32 %v167, %v168
    %v173 = vmul.f32 %v169, %v27
    %v174 = vmul.f32 %v170, %v28
    %v175 = vmul.f32 %v171, %v29
    %v176 = vmul.f32 %v172, %v30
    %v177 = vadd.f32 %v173, %v174
    %v178 = vadd.f32 %v177, %v175
    %v179 = vadd.f32 %v178, %v176
    %v180 = vrot.slane %v179, 4
    %v181 = vadd.f32 %v179, %v180
    %v182 = vrot.slane %v181, 2
    %v183 = vadd.f32 %v181, %v182
    %v184 = vrot.slane %v183, 1
    %v185 = vadd.f32 %v183, %v184
    %v186 = vadd.f32 %v185, %v32
    %s187 = scalar_lea.vmem %s0, 32
    %v188 = vld [vmem:[%s187] sm:$0xf]
    %v189 = vld [vmem:[%s187 + $0x4] sm:$0xf]
    %v190 = vld [vmem:[%s187 + $0x8] sm:$0xf]
    %v191 = vld [vmem:[%s187 + $0xc] sm:$0xf]
    %v192 = vld [vmem:[%s187 + $0x10] sm:$0xf]
    %v193 = vld [vmem:[%s187 + $0x14] sm:$0xf]
    %v194 = vld [vmem:[%s187 + $0x18] sm:$0xf]
    %v195 = vld [vmem:[%s187 + $0x1c] sm:$0xf]
    %v204 = vunpack.c.l.b16 %v188
    %v205 = vunpack.c.l.b16 %v189
    %v206 = vunpack.c.l.b16 %v190
    %v207 = vunpack.c.l.b16 %v191
    %v208 = vunpack.c.l.b16 %v192
    %v209 = vunpack.c.l.b16 %v193
    %v210 = vunpack.c.l.b16 %v194
    %v211 = vunpack.c.l.b16 %v195
    %v212 = vpack.c.b16 %v205, %v204
    %v213 = vpack.c.b16 %v207, %v206
    %v214 = vpack.c.b16 %v209, %v208
    %v215 = vpack.c.b16 %v211, %v210
    %220 = vmatprep.subr.bf16.mxu0 0
    %221 = vmatpush1.bf16.msra.mxu0 %v212
    %222 = vmatprep.subr.bf16.mxu0 0
    %223 = vmatpush1.bf16.msra.mxu0 %v213
    %224 = vmatprep.subr.bf16.mxu0 0
    %225 = vmatpush1.bf16.msra.mxu0 %v214
    %226 = vmatprep.subr.bf16.mxu0 0
    %227 = vmatpush1.bf16.msra.mxu0 %v215
    %228 = vmatprep.subr.bf16.mxu0 0
    %229 = vmatpush1.bf16.msra.mxu0 0
    %230 = vmatprep.subr.bf16.mxu0 0
    %231 = vmatpush1.bf16.msra.mxu0 0
    %232 = vmatprep.subr.bf16.mxu0 0
    %233 = vmatpush1.bf16.msra.mxu0 0
    %234 = vmatprep.subr.bf16.mxu0 0
    %235 = vmatpush1.bf16.msra.mxu0 0
    %236 = vmatprep.subr.bf16.mxu0 0
    %237 = vmatpush1.bf16.msra.mxu0 0
    %238 = vmatprep.subr.bf16.mxu0 0
    %239 = vmatpush1.bf16.msra.mxu0 0
    %240 = vmatprep.subr.bf16.mxu0 0
    %241 = vmatpush1.bf16.msra.mxu0 0
    %242 = vmatprep.subr.bf16.mxu0 0
    %243 = vmatpush1.bf16.msra.mxu0 0
    %244 = vmatprep.subr.bf16.mxu0 0
    %245 = vmatpush1.bf16.msra.mxu0 0
    %246 = vmatprep.subr.bf16.mxu0 0
    %247 = vmatpush1.bf16.msra.mxu0 0
    %248 = vmatprep.subr.bf16.mxu0 0
    %249 = vmatpush1.bf16.msra.mxu0 0
    %250 = vmatprep.subr.bf16.mxu0 0
    %251 = vmatpush1.bf16.msra.mxu0 0
    %252 = vmatprep.mubr.bf16.mxu0 0
    %253 = vmatmul.mubr.bf16.gmra.mrb[0].mxu0 %v97
    %v254 = vpop.f32.mrb[0].mxu0
    %v255 = vadd.f32 %v44, %v254
    %v256 = vpop.f32.mrb[0].mxu0
    %v257 = vpop.f32.mrb[0].mxu0
    %v258 = vadd.f32 %v49, %v257
    %v259 = vpop.f32.mrb[0].mxu0
    %260 = vmatprep.mubr.bf16.mxu0 0
    %261 = vmatmul.mubr.bf16.gmra.mrb[0].mxu0 %v100
    %v262 = vpop.f32.mrb[0].mxu0
    %v263 = vadd.f32 %v54, %v262
    %v264 = vpop.f32.mrb[0].mxu0
    %v265 = vpop.f32.mrb[0].mxu0
    %v266 = vadd.f32 %v59, %v265
    %v267 = vpop.f32.mrb[0].mxu0
    %268 = vdwg.mxu0
    %s269 = scalar_lea.vmem %s3, 32
    %270 = vst.msk [vmem:[%s269] sm:$0xff] %vm151, %v255
    %271 = vst.msk [vmem:[%s269 + $0x8] sm:$0xff] %vm151, %v258
    %272 = vst.msk [vmem:[%s269 + $0x10] sm:$0xff] %vm151, %v263
    %273 = vst.msk [vmem:[%s269 + $0x18] sm:$0xff] %vm151, %v266
    %v274 = vsel %vm151, %v255, 0.0
    %275 = vadd.xlane.f32.xlu0 %v274
    %v276 = vpop.xlane.xlu0 %275
    %v277 = vsel %vm151, %v258, 0.0
    %278 = vadd.xlane.f32.xlu0 %v277
    %v279 = vpop.xlane.xlu0 %278
    %v280 = vsel %vm151, %v263, 0.0
    %281 = vadd.xlane.f32.xlu0 %v280
    %v282 = vpop.xlane.xlu0 %281
    %v283 = vsel %vm151, %v266, 0.0
    %284 = vadd.xlane.f32.xlu0 %v283
    %v285 = vpop.xlane.xlu0 %284
    %v286 = vmul.f32 %v276, %v168
    %v287 = vmul.f32 %v279, %v168
    %v288 = vmul.f32 %v282, %v168
    %v289 = vmul.f32 %v285, %v168
    %v290 = vmul.f32 %v286, %v27
    %v291 = vmul.f32 %v287, %v28
    %v292 = vmul.f32 %v288, %v29
    %v293 = vmul.f32 %v289, %v30
    %v294 = vadd.f32 %v290, %v291
    %v295 = vadd.f32 %v294, %v292
    %v296 = vadd.f32 %v295, %v293
    %v297 = vrot.slane %v296, 4
    %v298 = vadd.f32 %v296, %v297
    %v299 = vrot.slane %v298, 2
    %v300 = vadd.f32 %v298, %v299
    %v301 = vrot.slane %v300, 1
    %v302 = vadd.f32 %v300, %v301
    %v303 = vadd.f32 %v302, %v32
    %v305 = vrot.slane %v303, 7
    %vm307 = vcmask 1040384
    %v308 = vsel %vm307, %v186, %v305
    %309 = vst [vmem:[#allocation2] sm:$0x3] %v308
    // Predicated region
    $region10: #{_forward_core.1} parent=1 // pred_check
      _
    $region11: #{_forward_core.1} parent=1 // pred_check_branch
      %311 = sbr.rel (0) target = $region13
    $region12: #{_forward_core.1} parent=1 // pred_region
      %s313 = ssub.s32 32, 32
      %314 = vsyncadd [#allocation3], %s313
      %s316 = sshll.u32 [#allocation2], 4
      %s317 = int_to_ptr.vmem [resolvable:$true] %s316
      %319 = dma.vmem_to_hbm [thread:$0]  %s317, 32, %s2, [#allocation3]
    $region13: #{_forward_core.1} parent=1 // pred_fallthru
      _
    // Predicated region
    $region14: #{_forward_core.1} parent=1 // pred_check
      _
    $region15: #{_forward_core.1} parent=1 // pred_check_branch
      %321 = sbr.rel (0) target = $region17
    $region16: #{_forward_core.1} parent=1 // pred_region
      _
    $region17: #{_forward_core.1} parent=1 // pred_fallthru
      _
    // Predicated region
    $region18: #{_forward_core.1} parent=1 // pred_check
      _
    $region19: #{_forward_core.1} parent=1 // pred_check_branch
      %323 = sbr.rel (0) target = $region21
    $region20: #{_forward_core.1} parent=1 // pred_region
      %324 = dma.done [#allocation3], 32
    $region21: #{_forward_core.1} parent=1 // pred_fallthru
      _
    // Predicated region
    $region22: #{_forward_core.1} parent=1 // pred_check
      _
    $region23: #{_forward_core.1} parent=1 // pred_check_branch
      %326 = sbr.rel (0) target = $region25
    $region24: #{_forward_core.1} parent=1 // pred_region
      _
    $region25: #{_forward_core.1} parent=1 // pred_fallthru
      _
    %327 = vsyncpa [#allocation3], 1

</llo_original>
